<compile_context>
chip_gen: v7x
topology: tpu7x:2x2x1
jax: 0.10.0
libtpu: 0.0.40
codegen_flags: <defaults>
</compile_context>

<pallas_src>
import numpy as np
import jax
import jax.numpy as jnp
from jax import lax
from jax.experimental import pallas as pl
from jax.experimental.pallas import tpu as pltpu


def _round_up(x, m):
    return ((x + m - 1) // m) * m


# ----------------------------------------------------------------------------
# Kernel 1: cross-correlation magnitude via overlap-save Toeplitz matmul
# ----------------------------------------------------------------------------
def _xcorr_kernel(lhs_ref, rhs_ref, mag_ref):
    # lhs: (M_tile, 2W) real-embedded signal chunks (one lag-tile per row)
    # rhs: (2W, 2T)    real-embedded conj(pilot) Toeplitz (constant)
    t = mag_ref.shape[1]
    c = jnp.dot(lhs_ref[...], rhs_ref[...], preferred_element_type=jnp.float32)
    cr = c[:, :t]
    ci = c[:, t:]
    mag_ref[...] = cr * cr + ci * ci            # lane-dense (M_tile, T) store


def xcorr_mag2(LHS, RHS, *, m_tile, lag_tile):
    r_pad, two_w = LHS.shape
    two_t = RHS.shape[1]
    return pl.pallas_call(
        _xcorr_kernel,
        out_shape=jax.ShapeDtypeStruct((r_pad, lag_tile), jnp.float32),
        grid=(r_pad // m_tile,),
        in_specs=[pl.BlockSpec((m_tile, two_w), lambda r: (r, 0)),
                  pl.BlockSpec((two_w, two_t), lambda r: (0, 0))],
        out_specs=pl.BlockSpec((m_tile, lag_tile), lambda r: (r, 0)),
        compiler_params=pltpu.CompilerParams(
            dimension_semantics=("parallel",)),      # megacore-shardable
    )(LHS, RHS)


def correct_start_offset(y, pilot_up):
    """Cross-correlation-peak alignment offset (host glue + kernel 1)."""
    y = np.asarray(y, np.complex64)
    pilot_up = np.asarray(pilot_up, np.complex64)
    Ny, Np = y.shape[0], pilot_up.shape[0]
    NL = Ny - Np + 1
    assert NL > 0 and Np > 0

    lag_tile = 256 if Np <= 1024 else 128         # lane-dense output width
    R = -(-NL // lag_tile)                        # lag-tile row count
    m_tile = min(256, _round_up(R, 8))
    r_pad = _round_up(R, m_tile)
    W = lag_tile + Np - 1
    w_pad = _round_up(W, 64)                      # 2*w_pad multiple of 128

    # LHS rows: contiguous zero-padded signal chunks y[r*T : r*T + W]
    y_pad = np.zeros(r_pad * lag_tile + w_pad, np.complex64)
    y_pad[:Ny] = y
    ridx = (np.arange(r_pad) * lag_tile)[:, None] + np.arange(w_pad)[None, :]
    chunks = y_pad[ridx]                          # (r_pad, w_pad) complex
    LHS = np.concatenate([chunks.real, chunks.imag], axis=1).astype(np.float32)

    # RHS: real-embedded conj(pilot) Toeplitz, built once (pilot is tiny).
    # c = y * conj(p):  cr = yr*pr + yi*pi ; ci = yi*pr - yr*pi
    w_i = np.arange(w_pad)[:, None]
    t_i = np.arange(lag_tile)[None, :]
    m = w_i - t_i
    valid = (m >= 0) & (m < Np)
    m_c = np.where(valid, m, 0)
    PR = np.where(valid, pilot_up.real[m_c], 0.0).astype(np.float32)
    PI = np.where(valid, pilot_up.imag[m_c], 0.0).astype(np.float32)
    RHS = np.zeros((2 * w_pad, 2 * lag_tile), np.float32)
    RHS[:w_pad, :lag_tile] = PR
    RHS[w_pad:, :lag_tile] = PI
    RHS[:w_pad, lag_tile:] = -PI
    RHS[w_pad:, lag_tile:] = PR

    mag = xcorr_mag2(jnp.asarray(LHS), jnp.asarray(RHS),
                     m_tile=m_tile, lag_tile=lag_tile)
    mag = np.asarray(jax.block_until_ready(mag)).reshape(-1)[:NL]
    # TODO(synk): a running max+argmax carried in SMEM would avoid this D2H.
    return int(np.argmax(mag))


# ----------------------------------------------------------------------------
# Kernel 2: sequential pilot-aided LMS equalizer loop (lookahead, tiled NS)
# ----------------------------------------------------------------------------
def _make_lms_kernel(*, chunk, L, sps, eq_off, pilot_len, lr, ns_real, dedup):
    two_lr = float(2.0 * lr)
    flip_center = L - 1 - (L // 2)   # flip(delta at L//2) — correct for any L
    n_groups = chunk // 8

    def kernel(*refs):
        if dedup:
            (ptr_ref, pti_ref, br_ref, bi_ref,
             yr_ref, yi_ref, res_ref, ft_ref) = refs
        else:
            (ptr_ref, pti_ref, br_ref, bi_ref,
             yr_ref, yi_ref, rr_ref, ri_ref, res_ref, ft_ref) = refs

        c = pl.program_id(0)

        # Initialize flipped taps once (resident output block carries them
        # across grid steps).
        @pl.when(c == 0)
        def _():
            lane_l = lax.broadcasted_iota(jnp.int32, (1, L), 1)
            ft_ref[0:1, :] = (lane_l == flip_center).astype(jnp.float32)
            ft_ref[1:2, :] = jnp.zeros((1, L), jnp.float32)

        # hoisted broadcasts
        lane8 = lax.broadcasted_iota(jnp.int32, (1, 8), 1)
        sub8 = lax.broadcasted_iota(jnp.int32, (8, 8), 0)
        zero8 = jnp.zeros((8, 8), jnp.float32)

        def group(g, carry):
            fr, fi = carry                       # flipped taps live in vregs
            base = pl.multiple_of(g * 8, 8)
            ytr = yr_ref[pl.ds(base, 8), :]      # one aligned (8, L) vld/ref
            yti = yi_ref[pl.ds(base, 8), :]
            if dedup:
                rtr, rti = ytr, yti              # reg == y_cut for LMS
            else:
                rtr = rr_ref[pl.ds(base, 8), :]
                rti = ri_ref[pl.ds(base, 8), :]

            # Direct output for the group's first step (full serial link once
            # per 8 steps; the remaining 7 use the exact one-step lookahead).
            y0r = ytr[0:1, :]
            y0i = yti[0:1, :]
            o_r = jnp.sum(y0r * fr - y0i * fi)
            o_i = jnp.sum(y0r * fi + y0i * fr)

            tile = zero8
            for r in range(8):                   # static peel of 8 steps
                i = c * chunk + base + r         # global step index

                # pilot[eq_off + i] via scalar SMEM reads
                p_r = ptr_ref[i]
                p_i = pti_ref[i]
                upd = jnp.logical_and(i * sps + 2 * eq_off < pilot_len,
                                      i < ns_real)
                e_r = jnp.where(upd, p_r - o_r, 0.0)
                e_i = jnp.where(upd, p_i - o_i, 0.0)

                # accumulate (o_r, o_i, e_r, e_i) into the group's (8,8) tile
                row = jnp.where(lane8 == 0, o_r,
                      jnp.where(lane8 == 1, o_i,
                      jnp.where(lane8 == 2, e_r,
                      jnp.where(lane8 == 3, e_i, 0.0))))
                tile = jnp.where(sub8 == r, row, tile)

                e2r = two_lr * e_r
                e2i = two_lr * e_i

                if r < 7:
                    # exact one-step lookahead (uses taps f_j, pre-update):
                    #   o_{j+1} = <y_{j+1}, f_j> + 2*lr*e_j*<y_{j+1}, conj(r_j)>
                    # with the data-only cross term b_j read from SMEM.
                    ynr = ytr[r + 1:r + 2, :]
                    yni = yti[r + 1:r + 2, :]
                    a_r = jnp.sum(ynr * fr - yni * fi)
                    a_i = jnp.sum(ynr * fi + yni * fr)
                    b_r = br_ref[i]
                    b_i = bi_ref[i]
                    o_r = a_r + (e2r * b_r - e2i * b_i)
                    o_i = a_i + (e2r * b_i + e2i * b_r)

                # tap update: f_{j+1} = f_j + 2*lr*e_j*conj(r_j)
                rr = rtr[r:r + 1, :]
                ri = rti[r:r + 1, :]
                fr = fr + (e2r * rr + e2i * ri)
                fi = fi + (e2i * rr - e2r * ri)

            # one (8, 8) result store per 8 steps
            res_ref[pl.ds(base, 8), :] = tile
            return (fr, fi)

        fr_f, fi_f = lax.fori_loop(0, n_groups, group,
                                   (ft_ref[0:1, :], ft_ref[1:2, :]))
        ft_ref[0:1, :] = fr_f
        ft_ref[1:2, :] = fi_f

    return kernel


def lms_equalize(pt_r, pt_i, b_r, b_i, Yr, Yi, Rr=None, Ri=None, *, L, sps,
                 eq_off, pilot_len, lr, ns_real, chunk):
    ns_pad = Yr.shape[0]
    dedup = Rr is None
    kernel = _make_lms_kernel(chunk=chunk, L=L, sps=sps, eq_off=eq_off,
                              pilot_len=pilot_len, lr=lr, ns_real=ns_real,
                              dedup=dedup)

    def smem_spec():
        return pl.BlockSpec(memory_space=pltpu.MemorySpace.SMEM)

    seg_spec = pl.BlockSpec((chunk, L), lambda c: (c, 0))
    in_specs = [smem_spec(), smem_spec(), smem_spec(), smem_spec(),
                seg_spec, seg_spec]
    args = [pt_r, pt_i, b_r, b_i, Yr, Yi]
    if not dedup:
        in_specs += [seg_spec, seg_spec]
        args += [Rr, Ri]

    return pl.pallas_call(
        kernel,
        out_shape=(jax.ShapeDtypeStruct((ns_pad, 8), jnp.float32),
                   jax.ShapeDtypeStruct((2, L), jnp.float32)),
        grid=(ns_pad // chunk,),
        in_specs=in_specs,
        out_specs=(pl.BlockSpec((chunk, 8), lambda c: (c, 0)),
                   pl.BlockSpec((2, L), lambda c: (0, 0))),
        compiler_params=pltpu.CompilerParams(
            dimension_semantics=("arbitrary",)),   # sequential dependence
    )(*args)


# ----------------------------------------------------------------------------
# Wrapper: PilotAEQ_SP.forward
# ----------------------------------------------------------------------------
def pilot_aeq_sp_forward(y, *, sps, lr, pilot_sequence, pilot_sequence_up,
                         filter_length=31, method="LMS"):
    y = np.asarray(y, np.complex64)
    pilot = np.asarray(pilot_sequence, np.complex64)
    pilot_up = np.asarray(pilot_sequence_up, np.complex64)
    sps = int(sps)
    lr = float(lr)
    L = int(filter_length)
    P = pilot.shape[0]
    assert P > 0

    # ---- correct_start: cross-correlation peak alignment (kernel 1) ----
    offset = correct_start_offset(y, pilot_up)
    y_cut = y[offset:]

    eq_off = (L - 1) // 2 // sps
    num_samp = y_cut.shape[0]
    NS = (num_samp - L) // sps
    TE = 2 * eq_off
    assert NS > 0

    dedup = method in ("LMS", "LMS_ZF")
    if dedup:
        reg = y_cut
    elif method == "ZF":
        reg = pilot_up
        assert reg.shape[0] >= (NS - 1) * sps + L
    else:
        raise ValueError(method)

    # tile size for the step axis (sublane multiple of 8)
    chunk = min(2048, _round_up(NS, 8))
    ns_pad = _round_up(NS, chunk)

    # unfold (host indexing glue) + zero-pad to ns_pad rows
    seg_idx = (np.arange(NS) * sps)[:, None] + np.arange(L)[None, :]
    Yseg = np.zeros((ns_pad, L), np.complex64)
    Yseg[:NS] = y_cut[seg_idx]
    if dedup:
        Rseg = Yseg                                # reg == y_cut: share planes
    else:
        Rseg = np.zeros((ns_pad, L), np.complex64)
        Rseg[:NS] = reg[seg_idx]

    # lookahead cross terms b[j] = <Yseg[j+1], conj(Rseg[j])>  (data-only)
    B = np.zeros(ns_pad, np.complex64)
    B[:-1] = np.sum(Yseg[1:] * np.conj(Rseg[:-1]), axis=1)

    # pilot[eq_off + i] table (scalars, consumed from SMEM); values for
    # indices past the update gate are never used -> clip.
    pt_idx = np.minimum(eq_off + np.arange(ns_pad), P - 1)
    pt_c = pilot[pt_idx]

    args = [jnp.asarray(pt_c.real.astype(np.float32)),
            jnp.asarray(pt_c.imag.astype(np.float32)),
            jnp.asarray(B.real.astype(np.float32)),
            jnp.asarray(B.imag.astype(np.float32)),
            jnp.asarray(Yseg.real, jnp.float32),
            jnp.asarray(Yseg.imag, jnp.float32)]
    if not dedup:
        args += [jnp.asarray(Rseg.real, jnp.float32),
                 jnp.asarray(Rseg.imag, jnp.float32)]

    res, ft = lms_equalize(*args, L=L, sps=sps, eq_off=eq_off, pilot_len=P,
                           lr=lr, ns_real=NS, chunk=chunk)
    res = np.asarray(jax.block_until_ready(res))
    ft = np.asarray(ft)

    out = (res[:NS, 0] + 1j * res[:NS, 1]).astype(np.complex64)
    e = (res[:NS, 2] + 1j * res[:NS, 3]).astype(np.complex64)
    taps = ((ft[0] + 1j * ft[1])[::-1]).astype(np.complex64)

    # peak_distortion[i] = mean(e[i] * conj(pilot[i:i+2*eq_off]))  (hoisted
    # out of the kernel; vectorized on host, truncating slices like torch).
    if TE > 0:
        w_idx = np.arange(NS)[:, None] + np.arange(TE)[None, :]
        valid = w_idx < P
        w_vals = np.where(valid, np.conj(pilot[np.minimum(w_idx, P - 1)]), 0)
        counts = np.maximum(valid.sum(axis=1), 1)
        pm = w_vals.sum(axis=1) / counts
    else:
        pm = np.zeros(NS, np.complex64)
    pd = (e * pm).astype(np.complex64)

    out_full = jnp.concatenate([jnp.zeros((100,), jnp.complex64),
                                jnp.asarray(out, jnp.complex64)])
    return out_full, e, pd, taps


# ----------------------------------------------------------------------------
# Pure numpy reference (same semantics) for a correctness check
# ----------------------------------------------------------------------------
def _numpy_reference(y, sps, lr, pilot, pilot_up, L):
    y = np.asarray(y, np.complex64)
    pilot = np.asarray(pilot, np.complex64)
    pilot_up = np.asarray(pilot_up, np.complex64)
    Ny, Np = y.shape[0], pilot_up.shape[0]
    corr = np.array([np.sum(y[n:n + Np] * np.conj(pilot_up))
                     for n in range(Ny - Np + 1)])
    offset = int(np.argmax(np.abs(corr)))
    y_cut = y[offset:]
    eq_off = (L - 1) // 2 // sps
    num_samp = y_cut.shape[0]
    NS = (num_samp - L) // sps
    taps = np.zeros(L, np.complex64); taps[L // 2] = 1.0
    out = np.zeros(NS, np.complex64)
    e = np.zeros(NS, np.complex64)
    pd = np.zeros(NS, np.complex64)
    reg = y_cut
    for i, k in enumerate(range(L, num_samp - 1, sps)):
        if i >= NS:
            break
        seg = y_cut[k - L:k]
        out[i] = np.sum(seg * taps[::-1])
        u = np.zeros(L, np.complex64)
        if i * sps + 2 * eq_off < pilot.shape[0]:
            e[i] = pilot[eq_off + i] - out[i]
            u = e[i] * np.conj(reg[k - L:k])[::-1]
        taps = (taps + 2 * lr * u).astype(np.complex64)
        pd[i] = np.mean(e[i] * np.conj(pilot[i:i + 2 * eq_off]))
    out_full = np.concatenate([np.zeros(100, np.complex64), out])
    return out_full, e, pd, taps


if __name__ == "__main__":
    key = jax.random.PRNGKey(0)
    sps, lr, L, P = 2, 1e-3, 31, 64

    k1, k2, k3, k4 = jax.random.split(key, 4)
    bits = np.asarray(jax.random.bernoulli(k1, 0.5, (P, 2)), np.float32)
    pilot = (((2 * bits[:, 0] - 1) + 1j * (2 * bits[:, 1] - 1))
             / np.sqrt(2)).astype(np.complex64)
    pilot_up = np.zeros(P * sps, np.complex64)
    pilot_up[::sps] = pilot

    channel = np.complex64(0.8 * np.exp(0.3j))
    head = 0.01 * np.asarray(jax.random.normal(k2, (5, 2)), np.float32)
    tail = 0.01 * np.asarray(jax.random.normal(k3, (20, 2)), np.float32)
    noise = 0.01 * np.asarray(jax.random.normal(k4, (P * sps, 2)), np.float32)
    y = np.concatenate([
        head[:, 0] + 1j * head[:, 1],
        channel * pilot_up + noise[:, 0] + 1j * noise[:, 1],
        tail[:, 0] + 1j * tail[:, 1],
    ]).astype(np.complex64)

    out, e, pd, taps = pilot_aeq_sp_forward(
        y, sps=sps, lr=lr, pilot_sequence=pilot, pilot_sequence_up=pilot_up,
        filter_length=L, method="LMS")
    out = jax.block_until_ready(out)

    ref_out, ref_e, ref_pd, ref_taps = _numpy_reference(y, sps, lr, pilot,
                                                        pilot_up, L)
    assert out.shape == ref_out.shape and out.dtype == jnp.complex64
    assert np.allclose(np.asarray(out), ref_out, atol=2e-3, rtol=2e-3)
    assert np.allclose(np.asarray(e), ref_e, atol=2e-3, rtol=2e-3)
    assert np.allclose(np.asarray(pd), ref_pd, atol=2e-3, rtol=2e-3)
    assert np.allclose(np.asarray(taps), ref_taps, atol=2e-3, rtol=2e-3)
    print("KERNEL_OK")
</pallas_src>

<mosaic_0001>
module attributes {stable_mosaic.version = 11 : i64} {
  func.func @_xcorr_kernel(%arg0: i32, %arg1: memref<8x768xf32, #tpu.memory_space<vmem>>, %arg2: memref<768x512xf32, #tpu.memory_space<vmem>>, %arg3: memref<8x256xf32, #tpu.memory_space<vmem>>) attributes {dimension_semantics = [#tpu.dimension_semantics<parallel>], iteration_bounds = array<i64: 1>, scalar_prefetch = 0 : i64, scratch_operands = 0 : i64, tpu.core_type = #tpu.core_type<tc>, window_params = [{transform_indices = @transform_0, window_bounds = array<i64: 8, 768>}, {pipeline_mode = #tpu.pipeline_mode<synchronous>, transform_indices = @transform_1, window_bounds = array<i64: 768, 512>}, {transform_indices = @transform_2, window_bounds = array<i64: 8, 256>}]} {
    %c0 = arith.constant 0 : index
    %c0_0 = arith.constant 0 : index
    %0 = vector.load %arg1[%c0, %c0_0] : memref<8x768xf32, #tpu.memory_space<vmem>>, vector<8x768xf32>
    %c0_1 = arith.constant 0 : index
    %c0_2 = arith.constant 0 : index
    %1 = vector.load %arg2[%c0_1, %c0_2] : memref<768x512xf32, #tpu.memory_space<vmem>>, vector<768x512xf32>
    %cst = arith.constant dense<0.000000e+00> : vector<8x512xf32>
    %2 = tpu.matmul %0, %1, %cst {dimension_numbers = #tpu.dot_dimension_numbers<[1], [0], [0], [1], [0, 0, 1, 1], [], []>} : vector<8x768xf32>, vector<768x512xf32>, vector<8x512xf32> -> vector<8x512xf32>
    %3 = vector.extract_strided_slice %2 {offsets = [0, 0], sizes = [8, 256], strides = [1, 1]} : vector<8x512xf32> to vector<8x256xf32>
    %4 = vector.extract_strided_slice %2 {offsets = [0, 256], sizes = [8, 256], strides = [1, 1]} : vector<8x512xf32> to vector<8x256xf32>
    %5 = arith.mulf %3, %3 : vector<8x256xf32>
    %6 = arith.mulf %4, %4 : vector<8x256xf32>
    %7 = arith.addf %5, %6 : vector<8x256xf32>
    %c0_3 = arith.constant 0 : index
    %c0_4 = arith.constant 0 : index
    %8 = vector.load %arg3[%c0_3, %c0_4] : memref<8x256xf32, #tpu.memory_space<vmem>>, vector<8x256xf32>
    tpu.vector_store %arg3[%c0_3, %c0_4], %7 {strides = array<i32>} : memref<8x256xf32, #tpu.memory_space<vmem>>, vector<8x256xf32>,
    return
  }
  func.func @transform_0(%arg0: i32) -> (i32, i32) {
    %c0_i32 = arith.constant 0 : i32
    %c0_i32_0 = arith.constant 0 : i32
    return %arg0, %c0_i32 : i32, i32
  }
  func.func @transform_1(%arg0: i32) -> (i32, i32) {
    %c0_i32 = arith.constant 0 : i32
    %c0_i32_0 = arith.constant 0 : i32
    %c0_i32_1 = arith.constant 0 : i32
    return %c0_i32, %c0_i32_0 : i32, i32
  }
  func.func @transform_2(%arg0: i32) -> (i32, i32) {
    %c0_i32 = arith.constant 0 : i32
    %c0_i32_0 = arith.constant 0 : i32
    return %arg0, %c0_i32 : i32, i32
  }
}

</mosaic_0001>

<llo_original>
// kernel: tpu_custom_call.1
$region0: #{tpu_custom_call.1}
  #allocation0 [shape = 'u32[]', space=smem, size = 0x4, offset = 0x4, fixed_abs, tag = 'smem constant byte address 0x4 - core index']
  #allocation1 [shape = 'u32[144,128]{1,0:T(1,128)}', space=vmem, size = 0x12000, scoped, tag = 'internal scratch']
  %s0 = inlined_call_operand.hbm [shape: f32[8,768], index: 0, kind: input, shape index: {}]
  %s1 = inlined_call_operand.hbm [shape: f32[768,512], index: 1, kind: input, shape index: {}]
  %s2 = inlined_call_operand.hbm [shape: f32[8,256], index: 2, kind: output, shape index: {}]
  %s3 = sld [smem:[#allocation0]]
  $region26: #{tpu_custom_call.1} parent=0
    _
  %s5 = ssub.s32 1, %s3
  %s6 = scalar_select 0, %s5, %s3
  $region1: #{tpu_custom_call.1} parent=0
    #allocation2 [shape = 'u8[24576]{0}', space=vmem, size = 0x6000, scoped, tag = 'input window, operand 0, single buffered']
    #allocation3 [shape = 's32[1]{0}', space=sflag, size = 0x4, scoped, tag = 'scoped memory for tpu_custom_call.1']
    #allocation4 [shape = 's32[1]{0}', space=sflag, size = 0x4, scoped, tag = 'scoped memory for tpu_custom_call.1']
    #allocation5 [shape = 'u8[1572864]{0}', space=vmem, size = 0x180000, scoped, tag = 'input window, operand 1, single buffered']
    #allocation6 [shape = 's32[1]{0}', space=sflag, size = 0x4, scoped, tag = 'scoped memory for tpu_custom_call.1']
    #allocation7 [shape = 'u8[8192]{0}', space=vmem, size = 0x2000, scoped, tag = 'output window, operand 0, single buffered']
    %7 = vsyncpa [#allocation3], 0
    %8 = vsyncpa [#allocation6], 0
    %9 = vsyncpa [#allocation4], 0
    // Predicated region
    $region2: #{tpu_custom_call.1} parent=1 // pred_check
      _
    $region3: #{tpu_custom_call.1} parent=1 // pred_check_branch
      %11 = sbr.rel (0) target = $region5
    $region4: #{tpu_custom_call.1} parent=1 // pred_region
      %s13 = ssub.s32 768, 768
      %14 = vsyncadd [#allocation3], %s13
      %s16 = sshll.u32 [#allocation2], 4
      %s17 = int_to_ptr.vmem [resolvable:$true] %s16
      %19 = dma.hbm_to_vmem [thread:$0]  %s0, 768, %s17, [#allocation3]
    $region5: #{tpu_custom_call.1} parent=1 // pred_fallthru
      _
    // Predicated region
    $region6: #{tpu_custom_call.1} parent=1 // pred_check
      _
    $region7: #{tpu_custom_call.1} parent=1 // pred_check_branch
      %21 = sbr.rel (0) target = $region9
    $region8: #{tpu_custom_call.1} parent=1 // pred_region
      %s23 = ssub.s32 49152, 49152
      %24 = vsyncadd [#allocation6], %s23
      %s25 = sshll.u32 [#allocation5], 4
      %s26 = int_to_ptr.vmem [resolvable:$true] %s25
      %31 = dma.hbm_to_vmem [thread:$0]  %s1, 49152, %s26, [#allocation6], 512, 512, 32
    $region9: #{tpu_custom_call.1} parent=1 // pred_fallthru
      _
    // Predicated region
    $region10: #{tpu_custom_call.1} parent=1 // pred_check
      _
    $region11: #{tpu_custom_call.1} parent=1 // pred_check_branch
      %33 = sbr.rel (0) target = $region13
    $region12: #{tpu_custom_call.1} parent=1 // pred_region
      %34 = dma.done [#allocation3], 768
    $region13: #{tpu_custom_call.1} parent=1 // pred_fallthru
      _
    // Predicated region
    $region14: #{tpu_custom_call.1} parent=1 // pred_check
      _
    $region15: #{tpu_custom_call.1} parent=1 // pred_check_branch
      %36 = sbr.rel (0) target = $region17
    $region16: #{tpu_custom_call.1} parent=1 // pred_region
      %37 = dma.done [#allocation6], 49152
    $region17: #{tpu_custom_call.1} parent=1 // pred_fallthru
      _
    %v38 = vld [vmem:[#allocation2] sm:$0xff]
    %v39 = vld [vmem:[#allocation2 + $0x8] sm:$0xff]
    %v40 = vld [vmem:[#allocation2 + $0x10] sm:$0xff]
    %v41 = vld [vmem:[#allocation2 + $0x18] sm:$0xff]
    %v42 = vld [vmem:[#allocation2 + $0x20] sm:$0xff]
    %v43 = vld [vmem:[#allocation2 + $0x28] sm:$0xff]
    %v44 = vld [vmem:[#allocation5] sm:$0xff]
    %v45 = vld [vmem:[#allocation5 + $0x8] sm:$0xff]
    %v46 = vld [vmem:[#allocation5 + $0x10] sm:$0xff]
    %v47 = vld [vmem:[#allocation5 + $0x18] sm:$0xff]
    %v48 = vld [vmem:[#allocation5 + $0x20] sm:$0xff]
    %v49 = vld [vmem:[#allocation5 + $0x28] sm:$0xff]
    %v50 = vld [vmem:[#allocation5 + $0x30] sm:$0xff]
    %v51 = vld [vmem:[#allocation5 + $0x38] sm:$0xff]
    %v52 = vld [vmem:[#allocation5 + $0x40] sm:$0xff]
    %v53 = vld [vmem:[#allocation5 + $0x48] sm:$0xff]
    %v54 = vld [vmem:[#allocation5 + $0x50] sm:$0xff]
    %v55 = vld [vmem:[#allocation5 + $0x58] sm:$0xff]
    %v56 = vld [vmem:[#allocation5 + $0x60] sm:$0xff]
    %v57 = vld [vmem:[#allocation5 + $0x68] sm:$0xff]
    %v58 = vld [vmem:[#allocation5 + $0x70] sm:$0xff]
    %v59 = vld [vmem:[#allocation5 + $0x78] sm:$0xff]
    %v60 = vld [vmem:[#allocation5 + $0x80] sm:$0xff]
    %v61 = vld [vmem:[#allocation5 + $0x88] sm:$0xff]
    %v62 = vld [vmem:[#allocation5 + $0x90] sm:$0xff]
    %v63 = vld [vmem:[#allocation5 + $0x98] sm:$0xff]
    %v64 = vld [vmem:[#allocation5 + $0xa0] sm:$0xff]
    %v65 = vld [vmem:[#allocation5 + $0xa8] sm:$0xff]
    %v66 = vld [vmem:[#allocation5 + $0xb0] sm:$0xff]
    %v67 = vld [vmem:[#allocation5 + $0xb8] sm:$0xff]
    %v68 = vld [vmem:[#allocation5 + $0xc0] sm:$0xff]
    %v69 = vld [vmem:[#allocation5 + $0xc8] sm:$0xff]
    %v70 = vld [vmem:[#allocation5 + $0xd0] sm:$0xff]
    %v71 = vld [vmem:[#allocation5 + $0xd8] sm:$0xff]
    %v72 = vld [vmem:[#allocation5 + $0xe0] sm:$0xff]
    %v73 = vld [vmem:[#allocation5 + $0xe8] sm:$0xff]
    %v74 = vld [vmem:[#allocation5 + $0xf0] sm:$0xff]
    %v75 = vld [vmem:[#allocation5 + $0xf8] sm:$0xff]
    %v76 = vld [vmem:[#allocation5 + $0x100] sm:$0xff]
    %v77 = vld [vmem:[#allocation5 + $0x108] sm:$0xff]
    %v78 = vld [vmem:[#allocation5 + $0x110] sm:$0xff]
    %v79 = vld [vmem:[#allocation5 + $0x118] sm:$0xff]
    %v80 = vld [vmem:[#allocation5 + $0x120] sm:$0xff]
    %v81 = vld [vmem:[#allocation5 + $0x128] sm:$0xff]
    %v82 = vld [vmem:[#allocation5 + $0x130] sm:$0xff]
    %v83 = vld [vmem:[#allocation5 + $0x138] sm:$0xff]
    %v84 = vld [vmem:[#allocation5 + $0x140] sm:$0xff]
    %v85 = vld [vmem:[#allocation5 + $0x148] sm:$0xff]
    %v86 = vld [vmem:[#allocation5 + $0x150] sm:$0xff]
    %v87 = vld [vmem:[#allocation5 + $0x158] sm:$0xff]
    %v88 = vld [vmem:[#allocation5 + $0x160] sm:$0xff]
    %v89 = vld [vmem:[#allocation5 + $0x168] sm:$0xff]
    %v90 = vld [vmem:[#allocation5 + $0x170] sm:$0xff]
    %v91 = vld [vmem:[#allocation5 + $0x178] sm:$0xff]
    %v92 = vld [vmem:[#allocation5 + $0x180] sm:$0xff]
    %v93 = vld [vmem:[#allocation5 + $0x188] sm:$0xff]
    %v94 = vld [vmem:[#allocation5 + $0x190] sm:$0xff]
    %v95 = vld [vmem:[#allocation5 + $0x198] sm:$0xff]
    %v96 = vld [vmem:[#allocation5 + $0x1a0] sm:$0xff]
    %v97 = vld [vmem:[#allocation5 + $0x1a8] sm:$0xff]
    %v98 = vld [vmem:[#allocation5 + $0x1b0] sm:$0xff]
    %v99 = vld [vmem:[#allocation5 + $0x1b8] sm:$0xff]
    %v100 = vld [vmem:[#allocation5 + $0x1c0] sm:$0xff]
    %v101 = vld [vmem:[#allocation5 + $0x1c8] sm:$0xff]
    %v102 = vld [vmem:[#allocation5 + $0x1d0] sm:$0xff]
    %v103 = vld [vmem:[#allocation5 + $0x1d8] sm:$0xff]
    %v104 = vld [vmem:[#allocation5 + $0x1e0] sm:$0xff]
    %v105 = vld [vmem:[#allocation5 + $0x1e8] sm:$0xff]
    %v106 = vld [vmem:[#allocation5 + $0x1f0] sm:$0xff]
    %v107 = vld [vmem:[#allocation5 + $0x1f8] sm:$0xff]
    %v108 = vld [vmem:[#allocation5 + $0x200] sm:$0xff]
    %v109 = vld [vmem:[#allocation5 + $0x208] sm:$0xff]
    %v110 = vld [vmem:[#allocation5 + $0x210] sm:$0xff]
    %v111 = vld [vmem:[#allocation5 + $0x218] sm:$0xff]
    %v112 = vld [vmem:[#allocation5 + $0x220] sm:$0xff]
    %v113 = vld [vmem:[#allocation5 + $0x228] sm:$0xff]
    %v114 = vld [vmem:[#allocation5 + $0x230] sm:$0xff]
    %v115 = vld [vmem:[#allocation5 + $0x238] sm:$0xff]
    %v116 = vld [vmem:[#allocation5 + $0x240] sm:$0xff]
    %v117 = vld [vmem:[#allocation5 + $0x248] sm:$0xff]
    %v118 = vld [vmem:[#allocation5 + $0x250] sm:$0xff]
    %v119 = vld [vmem:[#allocation5 + $0x258] sm:$0xff]
    %v120 = vld [vmem:[#allocation5 + $0x260] sm:$0xff]
    %v121 = vld [vmem:[#allocation5 + $0x268] sm:$0xff]
    %v122 = vld [vmem:[#allocation5 + $0x270] sm:$0xff]
    %v123 = vld [vmem:[#allocation5 + $0x278] sm:$0xff]
    %v124 = vld [vmem:[#allocation5 + $0x280] sm:$0xff]
    %v125 = vld [vmem:[#allocation5 + $0x288] sm:$0xff]
    %v126 = vld [vmem:[#allocation5 + $0x290] sm:$0xff]
    %v127 = vld [vmem:[#allocation5 + $0x298] sm:$0xff]
    %v128 = vld [vmem:[#allocation5 + $0x2a0] sm:$0xff]
    %v129 = vld [vmem:[#allocation5 + $0x2a8] sm:$0xff]
    %v130 = vld [vmem:[#allocation5 + $0x2b0] sm:$0xff]
    %v131 = vld [vmem:[#allocation5 + $0x2b8] sm:$0xff]
    %v132 = vld [vmem:[#allocation5 + $0x2c0] sm:$0xff]
    %v133 = vld [vmem:[#allocation5 + $0x2c8] sm:$0xff]
    %v134 = vld [vmem:[#allocation5 + $0x2d0] sm:$0xff]
    %v135 = vld [vmem:[#allocation5 + $0x2d8] sm:$0xff]
    %v136 = vld [vmem:[#allocation5 + $0x2e0] sm:$0xff]
    %v137 = vld [vmem:[#allocation5 + $0x2e8] sm:$0xff]
    %v138 = vld [vmem:[#allocation5 + $0x2f0] sm:$0xff]
    %v139 = vld [vmem:[#allocation5 + $0x2f8] sm:$0xff]
    %v140 = vld [vmem:[#allocation5 + $0x300] sm:$0xff]
    %v141 = vld [vmem:[#allocation5 + $0x308] sm:$0xff]
    %v142 = vld [vmem:[#allocation5 + $0x310] sm:$0xff]
    %v143 = vld [vmem:[#allocation5 + $0x318] sm:$0xff]
    %v144 = vld [vmem:[#allocation5 + $0x320] sm:$0xff]
    %v145 = vld [vmem:[#allocation5 + $0x328] sm:$0xff]
    %v146 = vld [vmem:[#allocation5 + $0x330] sm:$0xff]
    %v147 = vld [vmem:[#allocation5 + $0x338] sm:$0xff]
    %v148 = vld [vmem:[#allocation5 + $0x340] sm:$0xff]
    %v149 = vld [vmem:[#allocation5 + $0x348] sm:$0xff]
    %v150 = vld [vmem:[#allocation5 + $0x350] sm:$0xff]
    %v151 = vld [vmem:[#allocation5 + $0x358] sm:$0xff]
    %v152 = vld [vmem:[#allocation5 + $0x360] sm:$0xff]
    %v153 = vld [vmem:[#allocation5 + $0x368] sm:$0xff]
    %v154 = vld [vmem:[#allocation5 + $0x370] sm:$0xff]
    %v155 = vld [vmem:[#allocation5 + $0x378] sm:$0xff]
    %v156 = vld [vmem:[#allocation5 + $0x380] sm:$0xff]
    %v157 = vld [vmem:[#allocation5 + $0x388] sm:$0xff]
    %v158 = vld [vmem:[#allocation5 + $0x390] sm:$0xff]
    %v159 = vld [vmem:[#allocation5 + $0x398] sm:$0xff]
    %v160 = vld [vmem:[#allocation5 + $0x3a0] sm:$0xff]
    %v161 = vld [vmem:[#allocation5 + $0x3a8] sm:$0xff]
    %v162 = vld [vmem:[#allocation5 + $0x3b0] sm:$0xff]
    %v163 = vld [vmem:[#allocation5 + $0x3b8] sm:$0xff]
    %v164 = vld [vmem:[#allocation5 + $0x3c0] sm:$0xff]
    %v165 = vld [vmem:[#allocation5 + $0x3c8] sm:$0xff]
    %v166 = vld [vmem:[#allocation5 + $0x3d0] sm:$0xff]
    %v167 = vld [vmem:[#allocation5 + $0x3d8] sm:$0xff]
    %v168 = vld [vmem:[#allocation5 + $0x3e0] sm:$0xff]
    %v169 = vld [vmem:[#allocation5 + $0x3e8] sm:$0xff]
    %v170 = vld [vmem:[#allocation5 + $0x3f0] sm:$0xff]
    %v171 = vld [vmem:[#allocation5 + $0x3f8] sm:$0xff]
    %v172 = vld [vmem:[#allocation5 + $0x400] sm:$0xff]
    %v173 = vld [vmem:[#allocation5 + $0x408] sm:$0xff]
    %v174 = vld [vmem:[#allocation5 + $0x410] sm:$0xff]
    %v175 = vld [vmem:[#allocation5 + $0x418] sm:$0xff]
    %v176 = vld [vmem:[#allocation5 + $0x420] sm:$0xff]
    %v177 = vld [vmem:[#allocation5 + $0x428] sm:$0xff]
    %v178 = vld [vmem:[#allocation5 + $0x430] sm:$0xff]
    %v179 = vld [vmem:[#allocation5 + $0x438] sm:$0xff]
    %v180 = vld [vmem:[#allocation5 + $0x440] sm:$0xff]
    %v181 = vld [vmem:[#allocation5 + $0x448] sm:$0xff]
    %v182 = vld [vmem:[#allocation5 + $0x450] sm:$0xff]
    %v183 = vld [vmem:[#allocation5 + $0x458] sm:$0xff]
    %v184 = vld [vmem:[#allocation5 + $0x460] sm:$0xff]
    %v185 = vld [vmem:[#allocation5 + $0x468] sm:$0xff]
    %v186 = vld [vmem:[#allocation5 + $0x470] sm:$0xff]
    %v187 = vld [vmem:[#allocation5 + $0x478] sm:$0xff]
    %v188 = vld [vmem:[#allocation5 + $0x480] sm:$0xff]
    %v189 = vld [vmem:[#allocation5 + $0x488] sm:$0xff]
    %v190 = vld [vmem:[#allocation5 + $0x490] sm:$0xff]
    %v191 = vld [vmem:[#allocation5 + $0x498] sm:$0xff]
    %v192 = vld [vmem:[#allocation5 + $0x4a0] sm:$0xff]
    %v193 = vld [vmem:[#allocation5 + $0x4a8] sm:$0xff]
    %v194 = vld [vmem:[#allocation5 + $0x4b0] sm:$0xff]
    %v195 = vld [vmem:[#allocation5 + $0x4b8] sm:$0xff]
    %v196 = vld [vmem:[#allocation5 + $0x4c0] sm:$0xff]
    %v197 = vld [vmem:[#allocation5 + $0x4c8] sm:$0xff]
    %v198 = vld [vmem:[#allocation5 + $0x4d0] sm:$0xff]
    %v199 = vld [vmem:[#allocation5 + $0x4d8] sm:$0xff]
    %v200 = vld [vmem:[#allocation5 + $0x4e0] sm:$0xff]
    %v201 = vld [vmem:[#allocation5 + $0x4e8] sm:$0xff]
    %v202 = vld [vmem:[#allocation5 + $0x4f0] sm:$0xff]
    %v203 = vld [vmem:[#allocation5 + $0x4f8] sm:$0xff]
    %v204 = vld [vmem:[#allocation5 + $0x500] sm:$0xff]
    %v205 = vld [vmem:[#allocation5 + $0x508] sm:$0xff]
    %v206 = vld [vmem:[#allocation5 + $0x510] sm:$0xff]
    %v207 = vld [vmem:[#allocation5 + $0x518] sm:$0xff]
    %v208 = vld [vmem:[#allocation5 + $0x520] sm:$0xff]
    %v209 = vld [vmem:[#allocation5 + $0x528] sm:$0xff]
    %v210 = vld [vmem:[#allocation5 + $0x530] sm:$0xff]
    %v211 = vld [vmem:[#allocation5 + $0x538] sm:$0xff]
    %v212 = vld [vmem:[#allocation5 + $0x540] sm:$0xff]
    %v213 = vld [vmem:[#allocation5 + $0x548] sm:$0xff]
    %v214 = vld [vmem:[#allocation5 + $0x550] sm:$0xff]
    %v215 = vld [vmem:[#allocation5 + $0x558] sm:$0xff]
    %v216 = vld [vmem:[#allocation5 + $0x560] sm:$0xff]
    %v217 = vld [vmem:[#allocation5 + $0x568] sm:$0xff]
    %v218 = vld [vmem:[#allocation5 + $0x570] sm:$0xff]
    %v219 = vld [vmem:[#allocation5 + $0x578] sm:$0xff]
    %v220 = vld [vmem:[#allocation5 + $0x580] sm:$0xff]
    %v221 = vld [vmem:[#allocation5 + $0x588] sm:$0xff]
    %v222 = vld [vmem:[#allocation5 + $0x590] sm:$0xff]
    %v223 = vld [vmem:[#allocation5 + $0x598] sm:$0xff]
    %v224 = vld [vmem:[#allocation5 + $0x5a0] sm:$0xff]
    %v225 = vld [vmem:[#allocation5 + $0x5a8] sm:$0xff]
    %v226 = vld [vmem:[#allocation5 + $0x5b0] sm:$0xff]
    %v227 = vld [vmem:[#allocation5 + $0x5b8] sm:$0xff]
    %v228 = vld [vmem:[#allocation5 + $0x5c0] sm:$0xff]
    %v229 = vld [vmem:[#allocation5 + $0x5c8] sm:$0xff]
    %v230 = vld [vmem:[#allocation5 + $0x5d0] sm:$0xff]
    %v231 = vld [vmem:[#allocation5 + $0x5d8] sm:$0xff]
    %v232 = vld [vmem:[#allocation5 + $0x5e0] sm:$0xff]
    %v233 = vld [vmem:[#allocation5 + $0x5e8] sm:$0xff]
    %v234 = vld [vmem:[#allocation5 + $0x5f0] sm:$0xff]
    %v235 = vld [vmem:[#allocation5 + $0x5f8] sm:$0xff]
    %v236 = vld [vmem:[#allocation5 + $0x600] sm:$0xff]
    %v237 = vld [vmem:[#allocation5 + $0x608] sm:$0xff]
    %v238 = vld [vmem:[#allocation5 + $0x610] sm:$0xff]
    %v239 = vld [vmem:[#allocation5 + $0x618] sm:$0xff]
    %v240 = vld [vmem:[#allocation5 + $0x620] sm:$0xff]
    %v241 = vld [vmem:[#allocation5 + $0x628] sm:$0xff]
    %v242 = vld [vmem:[#allocation5 + $0x630] sm:$0xff]
    %v243 = vld [vmem:[#allocation5 + $0x638] sm:$0xff]
    %v244 = vld [vmem:[#allocation5 + $0x640] sm:$0xff]
    %v245 = vld [vmem:[#allocation5 + $0x648] sm:$0xff]
    %v246 = vld [vmem:[#allocation5 + $0x650] sm:$0xff]
    %v247 = vld [vmem:[#allocation5 + $0x658] sm:$0xff]
    %v248 = vld [vmem:[#allocation5 + $0x660] sm:$0xff]
    %v249 = vld [vmem:[#allocation5 + $0x668] sm:$0xff]
    %v250 = vld [vmem:[#allocation5 + $0x670] sm:$0xff]
    %v251 = vld [vmem:[#allocation5 + $0x678] sm:$0xff]
    %v252 = vld [vmem:[#allocation5 + $0x680] sm:$0xff]
    %v253 = vld [vmem:[#allocation5 + $0x688] sm:$0xff]
    %v254 = vld [vmem:[#allocation5 + $0x690] sm:$0xff]
    %v255 = vld [vmem:[#allocation5 + $0x698] sm:$0xff]
    %v256 = vld [vmem:[#allocation5 + $0x6a0] sm:$0xff]
    %v257 = vld [vmem:[#allocation5 + $0x6a8] sm:$0xff]
    %v258 = vld [vmem:[#allocation5 + $0x6b0] sm:$0xff]
    %v259 = vld [vmem:[#allocation5 + $0x6b8] sm:$0xff]
    %v260 = vld [vmem:[#allocation5 + $0x6c0] sm:$0xff]
    %v261 = vld [vmem:[#allocation5 + $0x6c8] sm:$0xff]
    %v262 = vld [vmem:[#allocation5 + $0x6d0] sm:$0xff]
    %v263 = vld [vmem:[#allocation5 + $0x6d8] sm:$0xff]
    %v264 = vld [vmem:[#allocation5 + $0x6e0] sm:$0xff]
    %v265 = vld [vmem:[#allocation5 + $0x6e8] sm:$0xff]
    %v266 = vld [vmem:[#allocation5 + $0x6f0] sm:$0xff]
    %v267 = vld [vmem:[#allocation5 + $0x6f8] sm:$0xff]
    %v268 = vld [vmem:[#allocation5 + $0x700] sm:$0xff]
    %v269 = vld [vmem:[#allocation5 + $0x708] sm:$0xff]
    %v270 = vld [vmem:[#allocation5 + $0x710] sm:$0xff]
    %v271 = vld [vmem:[#allocation5 + $0x718] sm:$0xff]
    %v272 = vld [vmem:[#allocation5 + $0x720] sm:$0xff]
    %v273 = vld [vmem:[#allocation5 + $0x728] sm:$0xff]
    %v274 = vld [vmem:[#allocation5 + $0x730] sm:$0xff]
    %v275 = vld [vmem:[#allocation5 + $0x738] sm:$0xff]
    %v276 = vld [vmem:[#allocation5 + $0x740] sm:$0xff]
    %v277 = vld [vmem:[#allocation5 + $0x748] sm:$0xff]
    %v278 = vld [vmem:[#allocation5 + $0x750] sm:$0xff]
    %v279 = vld [vmem:[#allocation5 + $0x758] sm:$0xff]
    %v280 = vld [vmem:[#allocation5 + $0x760] sm:$0xff]
    %v281 = vld [vmem:[#allocation5 + $0x768] sm:$0xff]
    %v282 = vld [vmem:[#allocation5 + $0x770] sm:$0xff]
    %v283 = vld [vmem:[#allocation5 + $0x778] sm:$0xff]
    %v284 = vld [vmem:[#allocation5 + $0x780] sm:$0xff]
    %v285 = vld [vmem:[#allocation5 + $0x788] sm:$0xff]
    %v286 = vld [vmem:[#allocation5 + $0x790] sm:$0xff]
    %v287 = vld [vmem:[#allocation5 + $0x798] sm:$0xff]
    %v288 = vld [vmem:[#allocation5 + $0x7a0] sm:$0xff]
    %v289 = vld [vmem:[#allocation5 + $0x7a8] sm:$0xff]
    %v290 = vld [vmem:[#allocation5 + $0x7b0] sm:$0xff]
    %v291 = vld [vmem:[#allocation5 + $0x7b8] sm:$0xff]
    %v292 = vld [vmem:[#allocation5 + $0x7c0] sm:$0xff]
    %v293 = vld [vmem:[#allocation5 + $0x7c8] sm:$0xff]
    %v294 = vld [vmem:[#allocation5 + $0x7d0] sm:$0xff]
    %v295 = vld [vmem:[#allocation5 + $0x7d8] sm:$0xff]
    %v296 = vld [vmem:[#allocation5 + $0x7e0] sm:$0xff]
    %v297 = vld [vmem:[#allocation5 + $0x7e8] sm:$0xff]
    %v298 = vld [vmem:[#allocation5 + $0x7f0] sm:$0xff]
    %v299 = vld [vmem:[#allocation5 + $0x7f8] sm:$0xff]
    %v300 = vld [vmem:[#allocation5 + $0x800] sm:$0xff]
    %v301 = vld [vmem:[#allocation5 + $0x808] sm:$0xff]
    %v302 = vld [vmem:[#allocation5 + $0x810] sm:$0xff]
    %v303 = vld [vmem:[#allocation5 + $0x818] sm:$0xff]
    %v304 = vld [vmem:[#allocation5 + $0x820] sm:$0xff]
    %v305 = vld [vmem:[#allocation5 + $0x828] sm:$0xff]
    %v306 = vld [vmem:[#allocation5 + $0x830] sm:$0xff]
    %v307 = vld [vmem:[#allocation5 + $0x838] sm:$0xff]
    %v308 = vld [vmem:[#allocation5 + $0x840] sm:$0xff]
    %v309 = vld [vmem:[#allocation5 + $0x848] sm:$0xff]
    %v310 = vld [vmem:[#allocation5 + $0x850] sm:$0xff]
    %v311 = vld [vmem:[#allocation5 + $0x858] sm:$0xff]
    %v312 = vld [vmem:[#allocation5 + $0x860] sm:$0xff]
    %v313 = vld [vmem:[#allocation5 + $0x868] sm:$0xff]
    %v314 = vld [vmem:[#allocation5 + $0x870] sm:$0xff]
    %v315 = vld [vmem:[#allocation5 + $0x878] sm:$0xff]
    %v316 = vld [vmem:[#allocation5 + $0x880] sm:$0xff]
    %v317 = vld [vmem:[#allocation5 + $0x888] sm:$0xff]
    %v318 = vld [vmem:[#allocation5 + $0x890] sm:$0xff]
    %v319 = vld [vmem:[#allocation5 + $0x898] sm:$0xff]
    %v320 = vld [vmem:[#allocation5 + $0x8a0] sm:$0xff]
    %v321 = vld [vmem:[#allocation5 + $0x8a8] sm:$0xff]
    %v322 = vld [vmem:[#allocation5 + $0x8b0] sm:$0xff]
    %v323 = vld [vmem:[#allocation5 + $0x8b8] sm:$0xff]
    %v324 = vld [vmem:[#allocation5 + $0x8c0] sm:$0xff]
    %v325 = vld [vmem:[#allocation5 + $0x8c8] sm:$0xff]
    %v326 = vld [vmem:[#allocation5 + $0x8d0] sm:$0xff]
    %v327 = vld [vmem:[#allocation5 + $0x8d8] sm:$0xff]
    %v328 = vld [vmem:[#allocation5 + $0x8e0] sm:$0xff]
    %v329 = vld [vmem:[#allocation5 + $0x8e8] sm:$0xff]
    %v330 = vld [vmem:[#allocation5 + $0x8f0] sm:$0xff]
    %v331 = vld [vmem:[#allocation5 + $0x8f8] sm:$0xff]
    %v332 = vld [vmem:[#allocation5 + $0x900] sm:$0xff]
    %v333 = vld [vmem:[#allocation5 + $0x908] sm:$0xff]
    %v334 = vld [vmem:[#allocation5 + $0x910] sm:$0xff]
    %v335 = vld [vmem:[#allocation5 + $0x918] sm:$0xff]
    %v336 = vld [vmem:[#allocation5 + $0x920] sm:$0xff]
    %v337 = vld [vmem:[#allocation5 + $0x928] sm:$0xff]
    %v338 = vld [vmem:[#allocation5 + $0x930] sm:$0xff]
    %v339 = vld [vmem:[#allocation5 + $0x938] sm:$0xff]
    %v340 = vld [vmem:[#allocation5 + $0x940] sm:$0xff]
    %v341 = vld [vmem:[#allocation5 + $0x948] sm:$0xff]
    %v342 = vld [vmem:[#allocation5 + $0x950] sm:$0xff]
    %v343 = vld [vmem:[#allocation5 + $0x958] sm:$0xff]
    %v344 = vld [vmem:[#allocation5 + $0x960] sm:$0xff]
    %v345 = vld [vmem:[#allocation5 + $0x968] sm:$0xff]
    %v346 = vld [vmem:[#allocation5 + $0x970] sm:$0xff]
    %v347 = vld [vmem:[#allocation5 + $0x978] sm:$0xff]
    %v348 = vld [vmem:[#allocation5 + $0x980] sm:$0xff]
    %v349 = vld [vmem:[#allocation5 + $0x988] sm:$0xff]
    %v350 = vld [vmem:[#allocation5 + $0x990] sm:$0xff]
    %v351 = vld [vmem:[#allocation5 + $0x998] sm:$0xff]
    %v352 = vld [vmem:[#allocation5 + $0x9a0] sm:$0xff]
    %v353 = vld [vmem:[#allocation5 + $0x9a8] sm:$0xff]
    %v354 = vld [vmem:[#allocation5 + $0x9b0] sm:$0xff]
    %v355 = vld [vmem:[#allocation5 + $0x9b8] sm:$0xff]
    %v356 = vld [vmem:[#allocation5 + $0x9c0] sm:$0xff]
    %v357 = vld [vmem:[#allocation5 + $0x9c8] sm:$0xff]
    %v358 = vld [vmem:[#allocation5 + $0x9d0] sm:$0xff]
    %v359 = vld [vmem:[#allocation5 + $0x9d8] sm:$0xff]
    %v360 = vld [vmem:[#allocation5 + $0x9e0] sm:$0xff]
    %v361 = vld [vmem:[#allocation5 + $0x9e8] sm:$0xff]
    %v362 = vld [vmem:[#allocation5 + $0x9f0] sm:$0xff]
    %v363 = vld [vmem:[#allocation5 + $0x9f8] sm:$0xff]
    %v364 = vld [vmem:[#allocation5 + $0xa00] sm:$0xff]
    %v365 = vld [vmem:[#allocation5 + $0xa08] sm:$0xff]
    %v366 = vld [vmem:[#allocation5 + $0xa10] sm:$0xff]
    %v367 = vld [vmem:[#allocation5 + $0xa18] sm:$0xff]
    %v368 = vld [vmem:[#allocation5 + $0xa20] sm:$0xff]
    %v369 = vld [vmem:[#allocation5 + $0xa28] sm:$0xff]
    %v370 = vld [vmem:[#allocation5 + $0xa30] sm:$0xff]
    %v371 = vld [vmem:[#allocation5 + $0xa38] sm:$0xff]
    %v372 = vld [vmem:[#allocation5 + $0xa40] sm:$0xff]
    %v373 = vld [vmem:[#allocation5 + $0xa48] sm:$0xff]
    %v374 = vld [vmem:[#allocation5 + $0xa50] sm:$0xff]
    %v375 = vld [vmem:[#allocation5 + $0xa58] sm:$0xff]
    %v376 = vld [vmem:[#allocation5 + $0xa60] sm:$0xff]
    %v377 = vld [vmem:[#allocation5 + $0xa68] sm:$0xff]
    %v378 = vld [vmem:[#allocation5 + $0xa70] sm:$0xff]
    %v379 = vld [vmem:[#allocation5 + $0xa78] sm:$0xff]
    %v380 = vld [vmem:[#allocation5 + $0xa80] sm:$0xff]
    %v381 = vld [vmem:[#allocation5 + $0xa88] sm:$0xff]
    %v382 = vld [vmem:[#allocation5 + $0xa90] sm:$0xff]
    %v383 = vld [vmem:[#allocation5 + $0xa98] sm:$0xff]
    %v384 = vld [vmem:[#allocation5 + $0xaa0] sm:$0xff]
    %v385 = vld [vmem:[#allocation5 + $0xaa8] sm:$0xff]
    %v386 = vld [vmem:[#allocation5 + $0xab0] sm:$0xff]
    %v387 = vld [vmem:[#allocation5 + $0xab8] sm:$0xff]
    %v388 = vld [vmem:[#allocation5 + $0xac0] sm:$0xff]
    %v389 = vld [vmem:[#allocation5 + $0xac8] sm:$0xff]
    %v390 = vld [vmem:[#allocation5 + $0xad0] sm:$0xff]
    %v391 = vld [vmem:[#allocation5 + $0xad8] sm:$0xff]
    %v392 = vld [vmem:[#allocation5 + $0xae0] sm:$0xff]
    %v393 = vld [vmem:[#allocation5 + $0xae8] sm:$0xff]
    %v394 = vld [vmem:[#allocation5 + $0xaf0] sm:$0xff]
    %v395 = vld [vmem:[#allocation5 + $0xaf8] sm:$0xff]
    %v396 = vld [vmem:[#allocation5 + $0xb00] sm:$0xff]
    %v397 = vld [vmem:[#allocation5 + $0xb08] sm:$0xff]
    %v398 = vld [vmem:[#allocation5 + $0xb10] sm:$0xff]
    %v399 = vld [vmem:[#allocation5 + $0xb18] sm:$0xff]
    %v400 = vld [vmem:[#allocation5 + $0xb20] sm:$0xff]
    %v401 = vld [vmem:[#allocation5 + $0xb28] sm:$0xff]
    %v402 = vld [vmem:[#allocation5 + $0xb30] sm:$0xff]
    %v403 = vld [vmem:[#allocation5 + $0xb38] sm:$0xff]
    %v404 = vld [vmem:[#allocation5 + $0xb40] sm:$0xff]
    %v405 = vld [vmem:[#allocation5 + $0xb48] sm:$0xff]
    %v406 = vld [vmem:[#allocation5 + $0xb50] sm:$0xff]
    %v407 = vld [vmem:[#allocation5 + $0xb58] sm:$0xff]
    %v408 = vld [vmem:[#allocation5 + $0xb60] sm:$0xff]
    %v409 = vld [vmem:[#allocation5 + $0xb68] sm:$0xff]
    %v410 = vld [vmem:[#allocation5 + $0xb70] sm:$0xff]
    %v411 = vld [vmem:[#allocation5 + $0xb78] sm:$0xff]
    %v412 = vld [vmem:[#allocation5 + $0xb80] sm:$0xff]
    %v413 = vld [vmem:[#allocation5 + $0xb88] sm:$0xff]
    %v414 = vld [vmem:[#allocation5 + $0xb90] sm:$0xff]
    %v415 = vld [vmem:[#allocation5 + $0xb98] sm:$0xff]
    %v416 = vld [vmem:[#allocation5 + $0xba0] sm:$0xff]
    %v417 = vld [vmem:[#allocation5 + $0xba8] sm:$0xff]
    %v418 = vld [vmem:[#allocation5 + $0xbb0] sm:$0xff]
    %v419 = vld [vmem:[#allocation5 + $0xbb8] sm:$0xff]
    %v420 = vld [vmem:[#allocation5 + $0xbc0] sm:$0xff]
    %v421 = vld [vmem:[#allocation5 + $0xbc8] sm:$0xff]
    %v422 = vld [vmem:[#allocation5 + $0xbd0] sm:$0xff]
    %v423 = vld [vmem:[#allocation5 + $0xbd8] sm:$0xff]
    %v424 = vld [vmem:[#allocation5 + $0xbe0] sm:$0xff]
    %v425 = vld [vmem:[#allocation5 + $0xbe8] sm:$0xff]
    %v426 = vld [vmem:[#allocation5 + $0xbf0] sm:$0xff]
    %v427 = vld [vmem:[#allocation5 + $0xbf8] sm:$0xff]
    %428 = vmatprep.subr.mxu0 %v45
    %429 = vmatpush1.msra.mxu0 %v44
    %430 = vmatprep.subr.mxu0 %v49
    %431 = vmatpush1.msra.mxu0 %v48
    %432 = vmatprep.subr.mxu0 %v53
    %433 = vmatpush1.msra.mxu0 %v52
    %434 = vmatprep.subr.mxu0 %v57
    %435 = vmatpush1.msra.mxu0 %v56
    %436 = vmatprep.subr.mxu0 %v61
    %437 = vmatpush1.msra.mxu0 %v60
    %438 = vmatprep.subr.mxu0 %v65
    %439 = vmatpush1.msra.mxu0 %v64
    %440 = vmatprep.subr.mxu0 %v69
    %441 = vmatpush1.msra.mxu0 %v68
    %442 = vmatprep.subr.mxu0 %v73
    %443 = vmatpush1.msra.mxu0 %v72
    %444 = vmatprep.subr.mxu0 %v77
    %445 = vmatpush1.msra.mxu0 %v76
    %446 = vmatprep.subr.mxu0 %v81
    %447 = vmatpush1.msra.mxu0 %v80
    %448 = vmatprep.subr.mxu0 %v85
    %449 = vmatpush1.msra.mxu0 %v84
    %450 = vmatprep.subr.mxu0 %v89
    %451 = vmatpush1.msra.mxu0 %v88
    %452 = vmatprep.subr.mxu0 %v93
    %453 = vmatpush1.msra.mxu0 %v92
    %454 = vmatprep.subr.mxu0 %v97
    %455 = vmatpush1.msra.mxu0 %v96
    %456 = vmatprep.subr.mxu0 %v101
    %457 = vmatpush1.msra.mxu0 %v100
    %458 = vmatprep.subr.mxu0 %v105
    %459 = vmatpush1.msra.mxu0 %v104
    %460 = vmatprep.subr.mxu0 %v109
    %461 = vmatpush1.msra.mxu0 %v108
    %462 = vmatprep.subr.mxu0 %v113
    %463 = vmatpush1.msra.mxu0 %v112
    %464 = vmatprep.subr.mxu0 %v117
    %465 = vmatpush1.msra.mxu0 %v116
    %466 = vmatprep.subr.mxu0 %v121
    %467 = vmatpush1.msra.mxu0 %v120
    %468 = vmatprep.subr.mxu0 %v125
    %469 = vmatpush1.msra.mxu0 %v124
    %470 = vmatprep.subr.mxu0 %v129
    %471 = vmatpush1.msra.mxu0 %v128
    %472 = vmatprep.subr.mxu0 %v133
    %473 = vmatpush1.msra.mxu0 %v132
    %474 = vmatprep.subr.mxu0 %v137
    %475 = vmatpush1.msra.mxu0 %v136
    %476 = vmatprep.subr.mxu0 %v141
    %477 = vmatpush1.msra.mxu0 %v140
    %478 = vmatprep.subr.mxu0 %v145
    %479 = vmatpush1.msra.mxu0 %v144
    %480 = vmatprep.subr.mxu0 %v149
    %481 = vmatpush1.msra.mxu0 %v148
    %482 = vmatprep.subr.mxu0 %v153
    %483 = vmatpush1.msra.mxu0 %v152
    %484 = vmatprep.subr.mxu0 %v157
    %485 = vmatpush1.msra.mxu0 %v156
    %486 = vmatprep.subr.mxu0 %v161
    %487 = vmatpush1.msra.mxu0 %v160
    %488 = vmatprep.subr.mxu0 %v165
    %489 = vmatpush1.msra.mxu0 %v164
    %490 = vmatprep.subr.mxu0 %v169
    %491 = vmatpush1.msra.mxu0 %v168
    %492 = vmatprep.mubr.f32.mxu0 %v39
    %493 = vmatmul.mubr.f32.gmra.mrb[0].mxu0 %v38
    %v494 = vpop.f32.mrb[0].mxu0
    %v495 = vadd.f32 0.0, %v494
    %v496 = vpop.f32.mrb[0].mxu0
    %v497 = vadd.f32 0.0, %v496
    %498 = vdwg.mxu0
    %499 = vmatprep.subr.mxu0 %v173
    %500 = vmatpush1.msra.mxu0 %v172
    %501 = vmatprep.subr.mxu0 %v177
    %502 = vmatpush1.msra.mxu0 %v176
    %503 = vmatprep.subr.mxu0 %v181
    %504 = vmatpush1.msra.mxu0 %v180
    %505 = vmatprep.subr.mxu0 %v185
    %506 = vmatpush1.msra.mxu0 %v184
    %507 = vmatprep.subr.mxu0 %v189
    %508 = vmatpush1.msra.mxu0 %v188
    %509 = vmatprep.subr.mxu0 %v193
    %510 = vmatpush1.msra.mxu0 %v192
    %511 = vmatprep.subr.mxu0 %v197
    %512 = vmatpush1.msra.mxu0 %v196
    %513 = vmatprep.subr.mxu0 %v201
    %514 = vmatpush1.msra.mxu0 %v200
    %515 = vmatprep.subr.mxu0 %v205
    %516 = vmatpush1.msra.mxu0 %v204
    %517 = vmatprep.subr.mxu0 %v209
    %518 = vmatpush1.msra.mxu0 %v208
    %519 = vmatprep.subr.mxu0 %v213
    %520 = vmatpush1.msra.mxu0 %v212
    %521 = vmatprep.subr.mxu0 %v217
    %522 = vmatpush1.msra.mxu0 %v216
    %523 = vmatprep.subr.mxu0 %v221
    %524 = vmatpush1.msra.mxu0 %v220
    %525 = vmatprep.subr.mxu0 %v225
    %526 = vmatpush1.msra.mxu0 %v224
    %527 = vmatprep.subr.mxu0 %v229
    %528 = vmatpush1.msra.mxu0 %v228
    %529 = vmatprep.subr.mxu0 %v233
    %530 = vmatpush1.msra.mxu0 %v232
    %531 = vmatprep.subr.mxu0 %v237
    %532 = vmatpush1.msra.mxu0 %v236
    %533 = vmatprep.subr.mxu0 %v241
    %534 = vmatpush1.msra.mxu0 %v240
    %535 = vmatprep.subr.mxu0 %v245
    %536 = vmatpush1.msra.mxu0 %v244
    %537 = vmatprep.subr.mxu0 %v249
    %538 = vmatpush1.msra.mxu0 %v248
    %539 = vmatprep.subr.mxu0 %v253
    %540 = vmatpush1.msra.mxu0 %v252
    %541 = vmatprep.subr.mxu0 %v257
    %542 = vmatpush1.msra.mxu0 %v256
    %543 = vmatprep.subr.mxu0 %v261
    %544 = vmatpush1.msra.mxu0 %v260
    %545 = vmatprep.subr.mxu0 %v265
    %546 = vmatpush1.msra.mxu0 %v264
    %547 = vmatprep.subr.mxu0 %v269
    %548 = vmatpush1.msra.mxu0 %v268
    %549 = vmatprep.subr.mxu0 %v273
    %550 = vmatpush1.msra.mxu0 %v272
    %551 = vmatprep.subr.mxu0 %v277
    %552 = vmatpush1.msra.mxu0 %v276
    %553 = vmatprep.subr.mxu0 %v281
    %554 = vmatpush1.msra.mxu0 %v280
    %555 = vmatprep.subr.mxu0 %v285
    %556 = vmatpush1.msra.mxu0 %v284
    %557 = vmatprep.subr.mxu0 %v289
    %558 = vmatpush1.msra.mxu0 %v288
    %559 = vmatprep.subr.mxu0 %v293
    %560 = vmatpush1.msra.mxu0 %v292
    %561 = vmatprep.subr.mxu0 %v297
    %562 = vmatpush1.msra.mxu0 %v296
    %563 = vmatprep.mubr.f32.mxu0 %v41
    %564 = vmatmul.mubr.f32.gmra.mrb[0].mxu0 %v40
    %v565 = vpop.f32.mrb[0].mxu0
    %v566 = vadd.f32 %v495, %v565
    %v567 = vpop.f32.mrb[0].mxu0
    %v568 = vadd.f32 %v497, %v567
    %569 = vdwg.mxu0
    %570 = vmatprep.subr.mxu0 %v301
    %571 = vmatpush1.msra.mxu0 %v300
    %572 = vmatprep.subr.mxu0 %v305
    %573 = vmatpush1.msra.mxu0 %v304
    %574 = vmatprep.subr.mxu0 %v309
    %575 = vmatpush1.msra.mxu0 %v308
    %576 = vmatprep.subr.mxu0 %v313
    %577 = vmatpush1.msra.mxu0 %v312
    %578 = vmatprep.subr.mxu0 %v317
    %579 = vmatpush1.msra.mxu0 %v316
    %580 = vmatprep.subr.mxu0 %v321
    %581 = vmatpush1.msra.mxu0 %v320
    %582 = vmatprep.subr.mxu0 %v325
    %583 = vmatpush1.msra.mxu0 %v324
    %584 = vmatprep.subr.mxu0 %v329
    %585 = vmatpush1.msra.mxu0 %v328
    %586 = vmatprep.subr.mxu0 %v333
    %587 = vmatpush1.msra.mxu0 %v332
    %588 = vmatprep.subr.mxu0 %v337
    %589 = vmatpush1.msra.mxu0 %v336
    %590 = vmatprep.subr.mxu0 %v341
    %591 = vmatpush1.msra.mxu0 %v340
    %592 = vmatprep.subr.mxu0 %v345
    %593 = vmatpush1.msra.mxu0 %v344
    %594 = vmatprep.subr.mxu0 %v349
    %595 = vmatpush1.msra.mxu0 %v348
    %596 = vmatprep.subr.mxu0 %v353
    %597 = vmatpush1.msra.mxu0 %v352
    %598 = vmatprep.subr.mxu0 %v357
    %599 = vmatpush1.msra.mxu0 %v356
    %600 = vmatprep.subr.mxu0 %v361
    %601 = vmatpush1.msra.mxu0 %v360
    %602 = vmatprep.subr.mxu0 %v365
    %603 = vmatpush1.msra.mxu0 %v364
    %604 = vmatprep.subr.mxu0 %v369
    %605 = vmatpush1.msra.mxu0 %v368
    %606 = vmatprep.subr.mxu0 %v373
    %607 = vmatpush1.msra.mxu0 %v372
    %608 = vmatprep.subr.mxu0 %v377
    %609 = vmatpush1.msra.mxu0 %v376
    %610 = vmatprep.subr.mxu0 %v381
    %611 = vmatpush1.msra.mxu0 %v380
    %612 = vmatprep.subr.mxu0 %v385
    %613 = vmatpush1.msra.mxu0 %v384
    %614 = vmatprep.subr.mxu0 %v389
    %615 = vmatpush1.msra.mxu0 %v388
    %616 = vmatprep.subr.mxu0 %v393
    %617 = vmatpush1.msra.mxu0 %v392
    %618 = vmatprep.subr.mxu0 %v397
    %619 = vmatpush1.msra.mxu0 %v396
    %620 = vmatprep.subr.mxu0 %v401
    %621 = vmatpush1.msra.mxu0 %v400
    %622 = vmatprep.subr.mxu0 %v405
    %623 = vmatpush1.msra.mxu0 %v404
    %624 = vmatprep.subr.mxu0 %v409
    %625 = vmatpush1.msra.mxu0 %v408
    %626 = vmatprep.subr.mxu0 %v413
    %627 = vmatpush1.msra.mxu0 %v412
    %628 = vmatprep.subr.mxu0 %v417
    %629 = vmatpush1.msra.mxu0 %v416
    %630 = vmatprep.subr.mxu0 %v421
    %631 = vmatpush1.msra.mxu0 %v420
    %632 = vmatprep.subr.mxu0 %v425
    %633 = vmatpush1.msra.mxu0 %v424
    %634 = vmatprep.mubr.f32.mxu0 %v43
    %635 = vmatmul.mubr.f32.gmra.mrb[0].mxu0 %v42
    %v636 = vpop.f32.mrb[0].mxu0
    %v637 = vadd.f32 %v566, %v636
    %v638 = vpop.f32.mrb[0].mxu0
    %v639 = vadd.f32 %v568, %v638
    %640 = vdwg.mxu0
    %641 = vmatprep.subr.mxu0 %v47
    %642 = vmatpush1.msra.mxu0 %v46
    %643 = vmatprep.subr.mxu0 %v51
    %644 = vmatpush1.msra.mxu0 %v50
    %645 = vmatprep.subr.mxu0 %v55
    %646 = vmatpush1.msra.mxu0 %v54
    %647 = vmatprep.subr.mxu0 %v59
    %648 = vmatpush1.msra.mxu0 %v58
    %649 = vmatprep.subr.mxu0 %v63
    %650 = vmatpush1.msra.mxu0 %v62
    %651 = vmatprep.subr.mxu0 %v67
    %652 = vmatpush1.msra.mxu0 %v66
    %653 = vmatprep.subr.mxu0 %v71
    %654 = vmatpush1.msra.mxu0 %v70
    %655 = vmatprep.subr.mxu0 %v75
    %656 = vmatpush1.msra.mxu0 %v74
    %657 = vmatprep.subr.mxu0 %v79
    %658 = vmatpush1.msra.mxu0 %v78
    %659 = vmatprep.subr.mxu0 %v83
    %660 = vmatpush1.msra.mxu0 %v82
    %661 = vmatprep.subr.mxu0 %v87
    %662 = vmatpush1.msra.mxu0 %v86
    %663 = vmatprep.subr.mxu0 %v91
    %664 = vmatpush1.msra.mxu0 %v90
    %665 = vmatprep.subr.mxu0 %v95
    %666 = vmatpush1.msra.mxu0 %v94
    %667 = vmatprep.subr.mxu0 %v99
    %668 = vmatpush1.msra.mxu0 %v98
    %669 = vmatprep.subr.mxu0 %v103
    %670 = vmatpush1.msra.mxu0 %v102
    %671 = vmatprep.subr.mxu0 %v107
    %672 = vmatpush1.msra.mxu0 %v106
    %673 = vmatprep.subr.mxu0 %v111
    %674 = vmatpush1.msra.mxu0 %v110
    %675 = vmatprep.subr.mxu0 %v115
    %676 = vmatpush1.msra.mxu0 %v114
    %677 = vmatprep.subr.mxu0 %v119
    %678 = vmatpush1.msra.mxu0 %v118
    %679 = vmatprep.subr.mxu0 %v123
    %680 = vmatpush1.msra.mxu0 %v122
    %681 = vmatprep.subr.mxu0 %v127
    %682 = vmatpush1.msra.mxu0 %v126
    %683 = vmatprep.subr.mxu0 %v131
    %684 = vmatpush1.msra.mxu0 %v130
    %685 = vmatprep.subr.mxu0 %v135
    %686 = vmatpush1.msra.mxu0 %v134
    %687 = vmatprep.subr.mxu0 %v139
    %688 = vmatpush1.msra.mxu0 %v138
    %689 = vmatprep.subr.mxu0 %v143
    %690 = vmatpush1.msra.mxu0 %v142
    %691 = vmatprep.subr.mxu0 %v147
    %692 = vmatpush1.msra.mxu0 %v146
    %693 = vmatprep.subr.mxu0 %v151
    %694 = vmatpush1.msra.mxu0 %v150
    %695 = vmatprep.subr.mxu0 %v155
    %696 = vmatpush1.msra.mxu0 %v154
    %697 = vmatprep.subr.mxu0 %v159
    %698 = vmatpush1.msra.mxu0 %v158
    %699 = vmatprep.subr.mxu0 %v163
    %700 = vmatpush1.msra.mxu0 %v162
    %701 = vmatprep.subr.mxu0 %v167
    %702 = vmatpush1.msra.mxu0 %v166
    %703 = vmatprep.subr.mxu0 %v171
    %704 = vmatpush1.msra.mxu0 %v170
    %705 = vmatprep.mubr.f32.mxu0 %v39
    %706 = vmatmul.mubr.f32.gmra.mrb[0].mxu0 %v38
    %v707 = vpop.f32.mrb[0].mxu0
    %v708 = vadd.f32 0.0, %v707
    %v709 = vpop.f32.mrb[0].mxu0
    %v710 = vadd.f32 0.0, %v709
    %711 = vdwg.mxu0
    %712 = vmatprep.subr.mxu0 %v175
    %713 = vmatpush1.msra.mxu0 %v174
    %714 = vmatprep.subr.mxu0 %v179
    %715 = vmatpush1.msra.mxu0 %v178
    %716 = vmatprep.subr.mxu0 %v183
    %717 = vmatpush1.msra.mxu0 %v182
    %718 = vmatprep.subr.mxu0 %v187
    %719 = vmatpush1.msra.mxu0 %v186
    %720 = vmatprep.subr.mxu0 %v191
    %721 = vmatpush1.msra.mxu0 %v190
    %722 = vmatprep.subr.mxu0 %v195
    %723 = vmatpush1.msra.mxu0 %v194
    %724 = vmatprep.subr.mxu0 %v199
    %725 = vmatpush1.msra.mxu0 %v198
    %726 = vmatprep.subr.mxu0 %v203
    %727 = vmatpush1.msra.mxu0 %v202
    %728 = vmatprep.subr.mxu0 %v207
    %729 = vmatpush1.msra.mxu0 %v206
    %730 = vmatprep.subr.mxu0 %v211
    %731 = vmatpush1.msra.mxu0 %v210
    %732 = vmatprep.subr.mxu0 %v215
    %733 = vmatpush1.msra.mxu0 %v214
    %734 = vmatprep.subr.mxu0 %v219
    %735 = vmatpush1.msra.mxu0 %v218
    %736 = vmatprep.subr.mxu0 %v223
    %737 = vmatpush1.msra.mxu0 %v222
    %738 = vmatprep.subr.mxu0 %v227
    %739 = vmatpush1.msra.mxu0 %v226
    %740 = vmatprep.subr.mxu0 %v231
    %741 = vmatpush1.msra.mxu0 %v230
    %742 = vmatprep.subr.mxu0 %v235
    %743 = vmatpush1.msra.mxu0 %v234
    %744 = vmatprep.subr.mxu0 %v239
    %745 = vmatpush1.msra.mxu0 %v238
    %746 = vmatprep.subr.mxu0 %v243
    %747 = vmatpush1.msra.mxu0 %v242
    %748 = vmatprep.subr.mxu0 %v247
    %749 = vmatpush1.msra.mxu0 %v246
    %750 = vmatprep.subr.mxu0 %v251
    %751 = vmatpush1.msra.mxu0 %v250
    %752 = vmatprep.subr.mxu0 %v255
    %753 = vmatpush1.msra.mxu0 %v254
    %754 = vmatprep.subr.mxu0 %v259
    %755 = vmatpush1.msra.mxu0 %v258
    %756 = vmatprep.subr.mxu0 %v263
    %757 = vmatpush1.msra.mxu0 %v262
    %758 = vmatprep.subr.mxu0 %v267
    %759 = vmatpush1.msra.mxu0 %v266
    %760 = vmatprep.subr.mxu0 %v271
    %761 = vmatpush1.msra.mxu0 %v270
    %762 = vmatprep.subr.mxu0 %v275
    %763 = vmatpush1.msra.mxu0 %v274
    %764 = vmatprep.subr.mxu0 %v279
    %765 = vmatpush1.msra.mxu0 %v278
    %766 = vmatprep.subr.mxu0 %v283
    %767 = vmatpush1.msra.mxu0 %v282
    %768 = vmatprep.subr.mxu0 %v287
    %769 = vmatpush1.msra.mxu0 %v286
    %770 = vmatprep.subr.mxu0 %v291
    %771 = vmatpush1.msra.mxu0 %v290
    %772 = vmatprep.subr.mxu0 %v295
    %773 = vmatpush1.msra.mxu0 %v294
    %774 = vmatprep.subr.mxu0 %v299
    %775 = vmatpush1.msra.mxu0 %v298
    %776 = vmatprep.mubr.f32.mxu0 %v41
    %777 = vmatmul.mubr.f32.gmra.mrb[0].mxu0 %v40
    %v778 = vpop.f32.mrb[0].mxu0
    %v779 = vadd.f32 %v708, %v778
    %v780 = vpop.f32.mrb[0].mxu0
    %v781 = vadd.f32 %v710, %v780
    %782 = vdwg.mxu0
    %783 = vmatprep.subr.mxu0 %v303
    %784 = vmatpush1.msra.mxu0 %v302
    %785 = vmatprep.subr.mxu0 %v307
    %786 = vmatpush1.msra.mxu0 %v306
    %787 = vmatprep.subr.mxu0 %v311
    %788 = vmatpush1.msra.mxu0 %v310
    %789 = vmatprep.subr.mxu0 %v315
    %790 = vmatpush1.msra.mxu0 %v314
    %791 = vmatprep.subr.mxu0 %v319
    %792 = vmatpush1.msra.mxu0 %v318
    %793 = vmatprep.subr.mxu0 %v323
    %794 = vmatpush1.msra.mxu0 %v322
    %795 = vmatprep.subr.mxu0 %v327
    %796 = vmatpush1.msra.mxu0 %v326
    %797 = vmatprep.subr.mxu0 %v331
    %798 = vmatpush1.msra.mxu0 %v330
    %799 = vmatprep.subr.mxu0 %v335
    %800 = vmatpush1.msra.mxu0 %v334
    %801 = vmatprep.subr.mxu0 %v339
    %802 = vmatpush1.msra.mxu0 %v338
    %803 = vmatprep.subr.mxu0 %v343
    %804 = vmatpush1.msra.mxu0 %v342
    %805 = vmatprep.subr.mxu0 %v347
    %806 = vmatpush1.msra.mxu0 %v346
    %807 = vmatprep.subr.mxu0 %v351
    %808 = vmatpush1.msra.mxu0 %v350
    %809 = vmatprep.subr.mxu0 %v355
    %810 = vmatpush1.msra.mxu0 %v354
    %811 = vmatprep.subr.mxu0 %v359
    %812 = vmatpush1.msra.mxu0 %v358
    %813 = vmatprep.subr.mxu0 %v363
    %814 = vmatpush1.msra.mxu0 %v362
    %815 = vmatprep.subr.mxu0 %v367
    %816 = vmatpush1.msra.mxu0 %v366
    %817 = vmatprep.subr.mxu0 %v371
    %818 = vmatpush1.msra.mxu0 %v370
    %819 = vmatprep.subr.mxu0 %v375
    %820 = vmatpush1.msra.mxu0 %v374
    %821 = vmatprep.subr.mxu0 %v379
    %822 = vmatpush1.msra.mxu0 %v378
    %823 = vmatprep.subr.mxu0 %v383
    %824 = vmatpush1.msra.mxu0 %v382
    %825 = vmatprep.subr.mxu0 %v387
    %826 = vmatpush1.msra.mxu0 %v386
    %827 = vmatprep.subr.mxu0 %v391
    %828 = vmatpush1.msra.mxu0 %v390
    %829 = vmatprep.subr.mxu0 %v395
    %830 = vmatpush1.msra.mxu0 %v394
    %831 = vmatprep.subr.mxu0 %v399
    %832 = vmatpush1.msra.mxu0 %v398
    %833 = vmatprep.subr.mxu0 %v403
    %834 = vmatpush1.msra.mxu0 %v402
    %835 = vmatprep.subr.mxu0 %v407
    %836 = vmatpush1.msra.mxu0 %v406
    %837 = vmatprep.subr.mxu0 %v411
    %838 = vmatpush1.msra.mxu0 %v410
    %839 = vmatprep.subr.mxu0 %v415
    %840 = vmatpush1.msra.mxu0 %v414
    %841 = vmatprep.subr.mxu0 %v419
    %842 = vmatpush1.msra.mxu0 %v418
    %843 = vmatprep.subr.mxu0 %v423
    %844 = vmatpush1.msra.mxu0 %v422
    %845 = vmatprep.subr.mxu0 %v427
    %846 = vmatpush1.msra.mxu0 %v426
    %847 = vmatprep.mubr.f32.mxu0 %v43
    %848 = vmatmul.mubr.f32.gmra.mrb[0].mxu0 %v42
    %v849 = vpop.f32.mrb[0].mxu0
    %v850 = vadd.f32 %v779, %v849
    %v851 = vpop.f32.mrb[0].mxu0
    %v852 = vadd.f32 %v781, %v851
    %853 = vdwg.mxu0
    %v854 = vmul.f32 %v637, %v637
    %v855 = vmul.f32 %v639, %v639
    %v856 = vmul.f32 %v850, %v850
    %v857 = vmul.f32 %v852, %v852
    %v858 = vadd.f32 %v854, %v856
    %v859 = vadd.f32 %v855, %v857
    %860 = vst [vmem:[#allocation7] sm:$0xff] %v858
    %861 = vst [vmem:[#allocation7 + $0x8] sm:$0xff] %v859
    // Predicated region
    $region18: #{tpu_custom_call.1} parent=1 // pred_check
      _
    $region19: #{tpu_custom_call.1} parent=1 // pred_check_branch
      %863 = sbr.rel (0) target = $region21
    $region20: #{tpu_custom_call.1} parent=1 // pred_region
      %s865 = ssub.s32 256, 256
      %866 = vsyncadd [#allocation4], %s865
      %s868 = sshll.u32 [#allocation7], 4
      %s869 = int_to_ptr.vmem [resolvable:$true] %s868
      %871 = dma.vmem_to_hbm [thread:$0]  %s869, 256, %s2, [#allocation4]
    $region21: #{tpu_custom_call.1} parent=1 // pred_fallthru
      _
    // Predicated region
    $region22: #{tpu_custom_call.1} parent=1 // pred_check
      _
    $region23: #{tpu_custom_call.1} parent=1 // pred_check_branch
      %873 = sbr.rel (0) target = $region25
    $region24: #{tpu_custom_call.1} parent=1 // pred_region
      %874 = dma.done [#allocation4], 256
    $region25: #{tpu_custom_call.1} parent=1 // pred_fallthru
      _
    %875 = vsyncpa [#allocation3], 1
    %876 = vsyncpa [#allocation6], 1
    %877 = vsyncpa [#allocation4], 1

</llo_original>
